<compile_context>
chip_gen: v6e
topology: v6e:2x2x1
jax: 0.10.0
libtpu: 0.0.40
codegen_flags: <defaults>
</compile_context>

<pallas_src>
import functools

import jax
import jax.numpy as jnp
from jax import lax
from jax.experimental import pallas as pl
from jax.experimental.pallas import tpu as pltpu

LANE = 128
SUBLANE = 8


# ----------------------------------------------------------------------------
# Fused kernel: per report-tile
#   hyp_logits = hyp_emb @ W + b ; ref_logits = ref_emb @ W + b   (MXU, bf16->f32)
#   reward[i]  = entity-level F1 between argmax predictions of hyp/ref,
#                0.0 if either side is empty (all-zero mask).
# ----------------------------------------------------------------------------
def _fused_f1radgraph_kernel(hyp_emb_ref, ref_emb_ref, hyp_mask_ref, ref_mask_ref,
                             w_ref, b_ref,
                             hyp_logits_ref, ref_logits_ref, rewards_ref,
                             *, num_labels, s_chunk):
    TN, S, H = hyp_emb_ref.shape
    Cpad = w_ref.shape[1]
    C = num_labels

    w = w_ref[...]                               # (H, Cpad)  bf16
    bias = b_ref[...]                            # (1, Cpad)  f32 (padded cols = -1e30)

    # --- classifier matmuls ---------------------------------------------------
    # f32 blocks arrive straight from HBM; cast to bf16 in-register just before
    # the dot (no separate XLA pre-cast pass, half the input HBM traffic).
    # S % 8 == 0 is asserted in the wrapper so the reshape is a layout no-op.
    hx = hyp_emb_ref[...].astype(jnp.bfloat16).reshape(TN * S, H)
    rx = ref_emb_ref[...].astype(jnp.bfloat16).reshape(TN * S, H)
    hl = (jnp.dot(hx, w, preferred_element_type=jnp.float32) + bias).reshape(TN, S, Cpad)
    rl = (jnp.dot(rx, w, preferred_element_type=jnp.float32) + bias).reshape(TN, S, Cpad)

    # bf16, C-columns-only writeback: dominant HBM write shrunk 8x vs f32/Cpad,
    # and no post-kernel slice is needed.
    hyp_logits_ref[...] = hl[:, :, :C].astype(hyp_logits_ref.dtype)
    ref_logits_ref[...] = rl[:, :, :C].astype(ref_logits_ref.dtype)

    # --- per-report F1 reward ("simple" / entity-level) -----------------------
    # Small class iota broadcast in the comparisons (never materialized at
    # (TN, S, Cpad)); the one-hot/count work is chunked over S so temporaries
    # stay vreg-resident instead of spilling to VMEM at realistic S.
    iota_c = lax.broadcasted_iota(jnp.int32, (1, 1, Cpad), 2)

    def chunk_counts(logits, mask):
        # logits: (TN, s_chunk, Cpad) f32, mask: (TN, s_chunk) f32
        mx = jnp.max(logits, axis=-1, keepdims=True)
        is_max = logits >= mx
        first = jnp.min(jnp.where(is_max, iota_c, Cpad), axis=-1, keepdims=True)
        oh = (iota_c == first).astype(jnp.float32) * mask[..., None]
        return jnp.sum(oh, axis=1)                          # (TN, Cpad)

    hm = hyp_mask_ref[...].astype(jnp.float32)
    rm = ref_mask_ref[...].astype(jnp.float32)

    hyp_counts = jnp.zeros((TN, Cpad), jnp.float32)
    ref_counts = jnp.zeros((TN, Cpad), jnp.float32)
    # static, fully-unrolled chunk loop (s_chunk | S, s_chunk % 8 == 0)
    for off in range(0, S, s_chunk):
        hyp_counts = hyp_counts + chunk_counts(hl[:, off:off + s_chunk, :],
                                               hm[:, off:off + s_chunk])
        ref_counts = ref_counts + chunk_counts(rl[:, off:off + s_chunk, :],
                                               rm[:, off:off + s_chunk])

    matched = jnp.sum(jnp.minimum(hyp_counts, ref_counts), axis=-1, keepdims=True)
    hyp_tot = jnp.sum(hyp_counts, axis=-1, keepdims=True)   # (TN, 1)
    ref_tot = jnp.sum(ref_counts, axis=-1, keepdims=True)

    # EUP approx reciprocals keep the divisions off the VALU slot
    precision = matched * pl.reciprocal(jnp.maximum(hyp_tot, 1.0), approx=True)
    recall = matched * pl.reciprocal(jnp.maximum(ref_tot, 1.0), approx=True)
    denom = precision + recall
    f1 = 2.0 * precision * recall * pl.reciprocal(jnp.maximum(denom, 1e-12), approx=True)
    f1 = jnp.where(denom > 0.0, f1, 0.0)

    empty = jnp.logical_or(hyp_tot == 0.0, ref_tot == 0.0)
    reward = jnp.where(empty, 0.0, f1)                      # (TN, 1)

    # lane-dense reward output (replicated across 128 lanes; column 0 read outside)
    rewards_ref[...] = jnp.broadcast_to(reward, rewards_ref.shape)


# ----------------------------------------------------------------------------
# Tile / VMEM budgeting
# ----------------------------------------------------------------------------
def _round_up(x, m):
    return (x + m - 1) // m * m


def _choose_s_chunk(S):
    for c in (128, 64, 32, 16, 8):
        if S % c == 0:
            return min(c, S)
    return S


def _vmem_bytes(TN, S, H, C, Cpad, s_chunk):
    """Per-grid-step VMEM working-set estimate (conservative)."""
    blk = (2 * TN * S * H * 4            # hyp + ref embedding blocks (f32)
           + 2 * TN * S * 4              # hyp + ref masks
           + H * Cpad * 2 + Cpad * 4     # classifier weight (bf16) + bias (f32)
           + 2 * TN * S * C * 2          # bf16 logits output blocks
           + TN * LANE * 4)              # rewards output block
    pipelined = 2 * blk                  # double-buffered pipeline
    internal = (2 * TN * S * Cpad * 4    # hl / rl f32 logits temporaries
                + 2 * TN * S * H * 2     # in-kernel bf16 casts of the embeddings
                + 6 * TN * s_chunk * Cpad * 4)  # reward chunk temporaries (headroom)
    return pipelined + internal


def _choose_tn(N, S, H, C, Cpad, s_chunk, budget_bytes=40 * 1024 * 1024):
    """Largest report tile (multiple of 8, <= 512) fitting the VMEM budget."""
    if N <= SUBLANE:
        return N
    tn = SUBLANE
    while True:
        cand = tn * 2
        if cand > min(N, 512):
            break
        if _vmem_bytes(cand, S, H, C, Cpad, s_chunk) > budget_bytes:
            break
        tn = cand
    # keep at least 2 grid steps when N allows it (megacore / 2 TCs on v7x)
    while tn > SUBLANE and pl.cdiv(N, tn) < 2:
        tn //= 2
    return tn


# ----------------------------------------------------------------------------
# F1RadGraph.forward equivalent (numeric inputs instead of strings)
# ----------------------------------------------------------------------------
def f1radgraph_forward(refs_emb, hyps_emb, refs_mask, hyps_mask, w, b,
                       reward_level="simple"):
    assert reward_level in ("simple", "partial", "complete", "all")
    # TODO(synk): only the 'simple' (entity-level F1) reward is implemented;
    # 'partial'/'complete'/'all' require relation-graph matching over dynamic
    # annotation structures with no Pallas equivalent.
    N, S, H = hyps_emb.shape
    assert refs_emb.shape == (N, S, H)
    assert S % SUBLANE == 0, "S must be a multiple of 8 (pad sequences upstream)"
    C = w.shape[1]
    Cpad = max(LANE, _round_up(C, LANE))

    s_chunk = _choose_s_chunk(S)
    TN = _choose_tn(N, S, H, C, Cpad, s_chunk)
    grid = (pl.cdiv(N, TN),)

    # Class padding: zero weights + -1e30 bias so padded classes never win the
    # argmax.  (Tiny one-time host-side prep; padded columns are never written.)
    w_pad = jnp.zeros((H, Cpad), jnp.bfloat16).at[:, :C].set(w.astype(jnp.bfloat16))
    b_pad = jnp.full((1, Cpad), -1e30, jnp.float32).at[:, :C].set(
        b.reshape(1, C).astype(jnp.float32))

    # Explicit VMEM budget (v7x has only 64 MiB physical; default scoped limit
    # is 16/32 MiB on v5e/v6e) — set to the estimated working set + headroom.
    vmem_est = _vmem_bytes(TN, S, H, C, Cpad, s_chunk)
    vmem_limit = int(min(max(vmem_est * 5 // 4, 32 * 1024 * 1024),
                         56 * 1024 * 1024))

    kernel = functools.partial(_fused_f1radgraph_kernel,
                               num_labels=C, s_chunk=s_chunk)

    hyp_logits, ref_logits, rewards = pl.pallas_call(
        kernel,
        out_shape=(
            jax.ShapeDtypeStruct((N, S, C), jnp.bfloat16),
            jax.ShapeDtypeStruct((N, S, C), jnp.bfloat16),
            jax.ShapeDtypeStruct((N, LANE), jnp.float32),
        ),
        grid=grid,
        in_specs=[
            pl.BlockSpec((TN, S, H), lambda i: (i, 0, 0)),   # hyp embeddings (as-is)
            pl.BlockSpec((TN, S, H), lambda i: (i, 0, 0)),   # ref embeddings (as-is)
            pl.BlockSpec((TN, S), lambda i: (i, 0)),         # hyp mask
            pl.BlockSpec((TN, S), lambda i: (i, 0)),         # ref mask
            pl.BlockSpec((H, Cpad), lambda i: (0, 0)),       # classifier weight
            pl.BlockSpec((1, Cpad), lambda i: (0, 0)),       # classifier bias
        ],
        out_specs=(
            pl.BlockSpec((TN, S, C), lambda i: (i, 0, 0)),
            pl.BlockSpec((TN, S, C), lambda i: (i, 0, 0)),
            pl.BlockSpec((TN, LANE), lambda i: (i, 0)),
        ),
        compiler_params=pltpu.CompilerParams(
            dimension_semantics=("parallel",),
            vmem_limit_bytes=vmem_limit),
    )(hyps_emb, refs_emb, hyps_mask, refs_mask, w_pad, b_pad)

    reward_list = rewards[:, 0]                     # (N,)
    mean_reward = jnp.mean(reward_list)             # trivial N-element reduction
    # annotation lists in the original are JSON dicts; return the predicted
    # logits (exactly C label columns, bf16) as their numeric stand-in.
    return mean_reward, reward_list, hyp_logits, ref_logits


if __name__ == "__main__":
    N, S, H, C = 2, 8, 32, 16                      # reports, seq, hidden, labels

    key = jax.random.PRNGKey(0)
    k1, k2, k3, k4 = jax.random.split(key, 4)
    hyps_emb = jax.random.normal(k1, (N, S, H), dtype=jnp.float32)
    refs_emb = jax.random.normal(k2, (N, S, H), dtype=jnp.float32)

    # valid-token masks (last report's reference has a couple of padded tokens)
    hyps_mask = jnp.ones((N, S), dtype=jnp.float32)
    refs_mask = jnp.ones((N, S), dtype=jnp.float32).at[1, 6:].set(0.0)

    # deterministic synthetic classifier parameters
    w = 0.1 * jax.random.normal(k3, (H, C), dtype=jnp.float32)
    b = 0.01 * jax.random.normal(k4, (1, C), dtype=jnp.float32)

    mean_reward, reward_list, hyp_ann, ref_ann = f1radgraph_forward(
        refs_emb, hyps_emb, refs_mask, hyps_mask, w, b, reward_level="simple")

    jax.block_until_ready((mean_reward, reward_list, hyp_ann, ref_ann))
    print("KERNEL_OK")
</pallas_src>

<mosaic_0001>
module attributes {stable_mosaic.version = 11 : i64} {
  func.func @_fused_f1radgraph_kernel(%arg0: i32, %arg1: memref<2x8x32xf32, #tpu.memory_space<vmem>>, %arg2: memref<2x8x32xf32, #tpu.memory_space<vmem>>, %arg3: memref<2x8xf32, #tpu.memory_space<vmem>>, %arg4: memref<2x8xf32, #tpu.memory_space<vmem>>, %arg5: memref<32x128xbf16, #tpu.memory_space<vmem>>, %arg6: memref<1x128xf32, #tpu.memory_space<vmem>>, %arg7: memref<2x8x16xbf16, #tpu.memory_space<vmem>>, %arg8: memref<2x8x16xbf16, #tpu.memory_space<vmem>>, %arg9: memref<2x128xf32, #tpu.memory_space<vmem>>) attributes {dimension_semantics = [#tpu.dimension_semantics<parallel>], iteration_bounds = array<i64: 1>, scalar_prefetch = 0 : i64, scratch_operands = 0 : i64, tpu.core_type = #tpu.core_type<tc>, window_params = [{transform_indices = @transform_0, window_bounds = array<i64: 2, 8, 32>}, {transform_indices = @transform_1, window_bounds = array<i64: 2, 8, 32>}, {transform_indices = @transform_2, window_bounds = array<i64: 2, 8>}, {transform_indices = @transform_3, window_bounds = array<i64: 2, 8>}, {pipeline_mode = #tpu.pipeline_mode<synchronous>, transform_indices = @transform_4, window_bounds = array<i64: 32, 128>}, {pipeline_mode = #tpu.pipeline_mode<synchronous>, transform_indices = @transform_5, window_bounds = array<i64: 1, 128>}, {transform_indices = @transform_6, window_bounds = array<i64: 2, 8, 16>}, {transform_indices = @transform_7, window_bounds = array<i64: 2, 8, 16>}, {transform_indices = @transform_8, window_bounds = array<i64: 2, 128>}]} {
    %c0 = arith.constant 0 : index
    %c0_0 = arith.constant 0 : index
    %0 = vector.load %arg5[%c0, %c0_0] : memref<32x128xbf16, #tpu.memory_space<vmem>>, vector<32x128xbf16>
    %c0_1 = arith.constant 0 : index
    %c0_2 = arith.constant 0 : index
    %1 = vector.load %arg6[%c0_1, %c0_2] : memref<1x128xf32, #tpu.memory_space<vmem>>, vector<1x128xf32>
    %c0_3 = arith.constant 0 : index
    %c0_4 = arith.constant 0 : index
    %c0_5 = arith.constant 0 : index
    %2 = vector.load %arg1[%c0_3, %c0_4, %c0_5] : memref<2x8x32xf32, #tpu.memory_space<vmem>>, vector<2x8x32xf32>
    %3 = arith.truncf %2 : vector<2x8x32xf32> to vector<2x8x32xbf16>
    %4 = vector.shape_cast %3 : vector<2x8x32xbf16> to vector<16x32xbf16>
    %c0_6 = arith.constant 0 : index
    %c0_7 = arith.constant 0 : index
    %c0_8 = arith.constant 0 : index
    %5 = vector.load %arg2[%c0_6, %c0_7, %c0_8] : memref<2x8x32xf32, #tpu.memory_space<vmem>>, vector<2x8x32xf32>
    %6 = arith.truncf %5 : vector<2x8x32xf32> to vector<2x8x32xbf16>
    %7 = vector.shape_cast %6 : vector<2x8x32xbf16> to vector<16x32xbf16>
    %cst = arith.constant dense<0.000000e+00> : vector<16x128xf32>
    %8 = tpu.matmul %4, %0, %cst {dimension_numbers = #tpu.dot_dimension_numbers<[1], [0], [0], [1], [0, 0, 1, 1], [], []>} : vector<16x32xbf16>, vector<32x128xbf16>, vector<16x128xf32> -> vector<16x128xf32>
    %9 = vector.broadcast %1 : vector<1x128xf32> to vector<16x128xf32>
    %10 = arith.addf %8, %9 : vector<16x128xf32>
    %11 = vector.shape_cast %10 : vector<16x128xf32> to vector<2x8x128xf32>
    %cst_9 = arith.constant dense<0.000000e+00> : vector<16x128xf32>
    %12 = tpu.matmul %7, %0, %cst_9 {dimension_numbers = #tpu.dot_dimension_numbers<[1], [0], [0], [1], [0, 0, 1, 1], [], []>} : vector<16x32xbf16>, vector<32x128xbf16>, vector<16x128xf32> -> vector<16x128xf32>
    %13 = vector.broadcast %1 : vector<1x128xf32> to vector<16x128xf32>
    %14 = arith.addf %12, %13 : vector<16x128xf32>
    %15 = vector.shape_cast %14 : vector<16x128xf32> to vector<2x8x128xf32>
    %16 = vector.extract_strided_slice %11 {offsets = [0, 0, 0], sizes = [2, 8, 16], strides = [1, 1, 1]} : vector<2x8x128xf32> to vector<2x8x16xf32>
    %17 = arith.truncf %16 : vector<2x8x16xf32> to vector<2x8x16xbf16>
    %c0_10 = arith.constant 0 : index
    %c0_11 = arith.constant 0 : index
    %c0_12 = arith.constant 0 : index
    %18 = vector.load %arg7[%c0_10, %c0_11, %c0_12] : memref<2x8x16xbf16, #tpu.memory_space<vmem>>, vector<2x8x16xbf16>
    tpu.vector_store %arg7[%c0_10, %c0_11, %c0_12], %17 {strides = array<i32>} : memref<2x8x16xbf16, #tpu.memory_space<vmem>>, vector<2x8x16xbf16>,
    %19 = vector.extract_strided_slice %15 {offsets = [0, 0, 0], sizes = [2, 8, 16], strides = [1, 1, 1]} : vector<2x8x128xf32> to vector<2x8x16xf32>
    %20 = arith.truncf %19 : vector<2x8x16xf32> to vector<2x8x16xbf16>
    %c0_13 = arith.constant 0 : index
    %c0_14 = arith.constant 0 : index
    %c0_15 = arith.constant 0 : index
    %21 = vector.load %arg8[%c0_13, %c0_14, %c0_15] : memref<2x8x16xbf16, #tpu.memory_space<vmem>>, vector<2x8x16xbf16>
    tpu.vector_store %arg8[%c0_13, %c0_14, %c0_15], %20 {strides = array<i32>} : memref<2x8x16xbf16, #tpu.memory_space<vmem>>, vector<2x8x16xbf16>,
    %22 = tpu.iota {dimensions = array<i32: 2>} : vector<1x1x128xi32>
    %c0_16 = arith.constant 0 : index
    %c0_17 = arith.constant 0 : index
    %23 = vector.load %arg3[%c0_16, %c0_17] : memref<2x8xf32, #tpu.memory_space<vmem>>, vector<2x8xf32>
    %c0_18 = arith.constant 0 : index
    %c0_19 = arith.constant 0 : index
    %24 = vector.load %arg4[%c0_18, %c0_19] : memref<2x8xf32, #tpu.memory_space<vmem>>, vector<2x8xf32>
    %cst_20 = arith.constant 0.000000e+00 : f32
    %25 = vector.broadcast %cst_20 : f32 to vector<2x128xf32>
    %cst_21 = arith.constant 0.000000e+00 : f32
    %26 = vector.broadcast %cst_21 : f32 to vector<2x128xf32>
    %cst_22 = arith.constant dense<0xFF800000> : vector<2x8xf32>
    %27 = vector.multi_reduction <maximumf>, %11, %cst_22 [2] : vector<2x8x128xf32> to vector<2x8xf32>
    %28 = vector.shape_cast %27 : vector<2x8xf32> to vector<2x8x1xf32>
    %29 = vector.broadcast %28 : vector<2x8x1xf32> to vector<2x8x128xf32>
    %30 = arith.cmpf oge, %11, %29 : vector<2x8x128xf32>
    %c128_i32 = arith.constant 128 : i32
    %31 = vector.shape_cast %22 : vector<1x1x128xi32> to vector<1x1x128xi32>
    %32 = vector.broadcast %31 : vector<1x1x128xi32> to vector<2x8x128xi32>
    %33 = vector.broadcast %c128_i32 : i32 to vector<2x8x128xi32>
    %34 = arith.select %30, %32, %33 : vector<2x8x128xi1>, vector<2x8x128xi32>
    %cst_23 = arith.constant dense<2147483647> : vector<2x8xi32>
    %35 = vector.multi_reduction <minsi>, %34, %cst_23 [2] : vector<2x8x128xi32> to vector<2x8xi32>
    %36 = vector.shape_cast %35 : vector<2x8xi32> to vector<2x8x1xi32>
    %37 = vector.broadcast %22 : vector<1x1x128xi32> to vector<2x8x128xi32>
    %38 = vector.broadcast %36 : vector<2x8x1xi32> to vector<2x8x128xi32>
    %39 = arith.cmpi eq, %37, %38 : vector<2x8x128xi32>
    %40 = arith.extui %39 : vector<2x8x128xi1> to vector<2x8x128xi32>
    %41 = arith.sitofp %40 : vector<2x8x128xi32> to vector<2x8x128xf32>
    %42 = vector.shape_cast %23 : vector<2x8xf32> to vector<2x8x1xf32>
    %43 = vector.broadcast %42 : vector<2x8x1xf32> to vector<2x8x128xf32>
    %44 = arith.mulf %41, %43 : vector<2x8x128xf32>
    %cst_24 = arith.constant dense<0.000000e+00> : vector<2x128xf32>
    %45 = vector.multi_reduction <add>, %44, %cst_24 [1] : vector<2x8x128xf32> to vector<2x128xf32>
    %46 = arith.addf %25, %45 : vector<2x128xf32>
    %cst_25 = arith.constant dense<0xFF800000> : vector<2x8xf32>
    %47 = vector.multi_reduction <maximumf>, %15, %cst_25 [2] : vector<2x8x128xf32> to vector<2x8xf32>
    %48 = vector.shape_cast %47 : vector<2x8xf32> to vector<2x8x1xf32>
    %49 = vector.broadcast %48 : vector<2x8x1xf32> to vector<2x8x128xf32>
    %50 = arith.cmpf oge, %15, %49 : vector<2x8x128xf32>
    %c128_i32_26 = arith.constant 128 : i32
    %51 = vector.shape_cast %22 : vector<1x1x128xi32> to vector<1x1x128xi32>
    %52 = vector.broadcast %51 : vector<1x1x128xi32> to vector<2x8x128xi32>
    %53 = vector.broadcast %c128_i32_26 : i32 to vector<2x8x128xi32>
    %54 = arith.select %50, %52, %53 : vector<2x8x128xi1>, vector<2x8x128xi32>
    %cst_27 = arith.constant dense<2147483647> : vector<2x8xi32>
    %55 = vector.multi_reduction <minsi>, %54, %cst_27 [2] : vector<2x8x128xi32> to vector<2x8xi32>
    %56 = vector.shape_cast %55 : vector<2x8xi32> to vector<2x8x1xi32>
    %57 = vector.broadcast %22 : vector<1x1x128xi32> to vector<2x8x128xi32>
    %58 = vector.broadcast %56 : vector<2x8x1xi32> to vector<2x8x128xi32>
    %59 = arith.cmpi eq, %57, %58 : vector<2x8x128xi32>
    %60 = arith.extui %59 : vector<2x8x128xi1> to vector<2x8x128xi32>
    %61 = arith.sitofp %60 : vector<2x8x128xi32> to vector<2x8x128xf32>
    %62 = vector.shape_cast %24 : vector<2x8xf32> to vector<2x8x1xf32>
    %63 = vector.broadcast %62 : vector<2x8x1xf32> to vector<2x8x128xf32>
    %64 = arith.mulf %61, %63 : vector<2x8x128xf32>
    %cst_28 = arith.constant dense<0.000000e+00> : vector<2x128xf32>
    %65 = vector.multi_reduction <add>, %64, %cst_28 [1] : vector<2x8x128xf32> to vector<2x128xf32>
    %66 = arith.addf %26, %65 : vector<2x128xf32>
    %67 = arith.minimumf %46, %66 : vector<2x128xf32>
    %cst_29 = arith.constant dense<0.000000e+00> : vector<2xf32>
    %68 = vector.multi_reduction <add>, %67, %cst_29 [1] : vector<2x128xf32> to vector<2xf32>
    %69 = vector.shape_cast %68 : vector<2xf32> to vector<2x1xf32>
    %cst_30 = arith.constant dense<0.000000e+00> : vector<2xf32>
    %70 = vector.multi_reduction <add>, %46, %cst_30 [1] : vector<2x128xf32> to vector<2xf32>
    %71 = vector.shape_cast %70 : vector<2xf32> to vector<2x1xf32>
    %cst_31 = arith.constant dense<0.000000e+00> : vector<2xf32>
    %72 = vector.multi_reduction <add>, %66, %cst_31 [1] : vector<2x128xf32> to vector<2xf32>
    %73 = vector.shape_cast %72 : vector<2xf32> to vector<2x1xf32>
    %cst_32 = arith.constant 1.000000e+00 : f32
    %74 = vector.broadcast %cst_32 : f32 to vector<2x1xf32>
    %75 = arith.maximumf %71, %74 : vector<2x1xf32>
    %76 = tpu.reciprocal %75 {approx = true} : vector<2x1xf32> -> vector<2x1xf32>
    %77 = arith.mulf %69, %76 : vector<2x1xf32>
    %cst_33 = arith.constant 1.000000e+00 : f32
    %78 = vector.broadcast %cst_33 : f32 to vector<2x1xf32>
    %79 = arith.maximumf %73, %78 : vector<2x1xf32>
    %80 = tpu.reciprocal %79 {approx = true} : vector<2x1xf32> -> vector<2x1xf32>
    %81 = arith.mulf %69, %80 : vector<2x1xf32>
    %82 = arith.addf %77, %81 : vector<2x1xf32>
    %cst_34 = arith.constant 2.000000e+00 : f32
    %83 = vector.broadcast %cst_34 : f32 to vector<2x1xf32>
    %84 = arith.mulf %83, %77 : vector<2x1xf32>
    %85 = arith.mulf %84, %81 : vector<2x1xf32>
    %cst_35 = arith.constant 9.99999996E-13 : f32
    %86 = vector.broadcast %cst_35 : f32 to vector<2x1xf32>
    %87 = arith.maximumf %82, %86 : vector<2x1xf32>
    %88 = tpu.reciprocal %87 {approx = true} : vector<2x1xf32> -> vector<2x1xf32>
    %89 = arith.mulf %85, %88 : vector<2x1xf32>
    %cst_36 = arith.constant 0.000000e+00 : f32
    %90 = vector.broadcast %cst_36 : f32 to vector<2x1xf32>
    %91 = arith.cmpf ogt, %82, %90 : vector<2x1xf32>
    %cst_37 = arith.constant 0.000000e+00 : f32
    %92 = vector.broadcast %cst_37 : f32 to vector<2x1xf32>
    %93 = arith.select %91, %89, %92 : vector<2x1xi1>, vector<2x1xf32>
    %cst_38 = arith.constant 0.000000e+00 : f32
    %94 = vector.broadcast %cst_38 : f32 to vector<2x1xf32>
    %95 = arith.cmpf oeq, %71, %94 : vector<2x1xf32>
    %cst_39 = arith.constant 0.000000e+00 : f32
    %96 = vector.broadcast %cst_39 : f32 to vector<2x1xf32>
    %97 = arith.cmpf oeq, %73, %96 : vector<2x1xf32>
    %98 = arith.ori %95, %97 : vector<2x1xi1>
    %cst_40 = arith.constant 0.000000e+00 : f32
    %99 = vector.broadcast %cst_40 : f32 to vector<2x1xf32>
    %100 = arith.select %98, %99, %93 : vector<2x1xi1>, vector<2x1xf32>
    %101 = vector.shape_cast %100 : vector<2x1xf32> to vector<2x1xf32>
    %102 = vector.broadcast %101 : vector<2x1xf32> to vector<2x128xf32>
    %c0_41 = arith.constant 0 : index
    %c0_42 = arith.constant 0 : index
    %103 = vector.load %arg9[%c0_41, %c0_42] : memref<2x128xf32, #tpu.memory_space<vmem>>, vector<2x128xf32>
    tpu.vector_store %arg9[%c0_41, %c0_42], %102 {strides = array<i32>} : memref<2x128xf32, #tpu.memory_space<vmem>>, vector<2x128xf32>,
    return
  }
  func.func @transform_0(%arg0: i32) -> (i32, i32, i32) {
    %c0_i32 = arith.constant 0 : i32
    %c0_i32_0 = arith.constant 0 : i32
    %c0_i32_1 = arith.constant 0 : i32
    return %arg0, %c0_i32, %c0_i32_0 : i32, i32, i32
  }
  func.func @transform_1(%arg0: i32) -> (i32, i32, i32) {
    %c0_i32 = arith.constant 0 : i32
    %c0_i32_0 = arith.constant 0 : i32
    %c0_i32_1 = arith.constant 0 : i32
    return %arg0, %c0_i32, %c0_i32_0 : i32, i32, i32
  }
  func.func @transform_2(%arg0: i32) -> (i32, i32) {
    %c0_i32 = arith.constant 0 : i32
    %c0_i32_0 = arith.constant 0 : i32
    return %arg0, %c0_i32 : i32, i32
  }
  func.func @transform_3(%arg0: i32) -> (i32, i32) {
    %c0_i32 = arith.constant 0 : i32
    %c0_i32_0 = arith.constant 0 : i32
    return %arg0, %c0_i32 : i32, i32
  }
  func.func @transform_4(%arg0: i32) -> (i32, i32) {
    %c0_i32 = arith.constant 0 : i32
    %c0_i32_0 = arith.constant 0 : i32
    %c0_i32_1 = arith.constant 0 : i32
    return %c0_i32, %c0_i32_0 : i32, i32
  }
  func.func @transform_5(%arg0: i32) -> (i32, i32) {
    %c0_i32 = arith.constant 0 : i32
    %c0_i32_0 = arith.constant 0 : i32
    %c0_i32_1 = arith.constant 0 : i32
    return %c0_i32, %c0_i32_0 : i32, i32
  }
  func.func @transform_6(%arg0: i32) -> (i32, i32, i32) {
    %c0_i32 = arith.constant 0 : i32
    %c0_i32_0 = arith.constant 0 : i32
    %c0_i32_1 = arith.constant 0 : i32
    return %arg0, %c0_i32, %c0_i32_0 : i32, i32, i32
  }
  func.func @transform_7(%arg0: i32) -> (i32, i32, i32) {
    %c0_i32 = arith.constant 0 : i32
    %c0_i32_0 = arith.constant 0 : i32
    %c0_i32_1 = arith.constant 0 : i32
    return %arg0, %c0_i32, %c0_i32_0 : i32, i32, i32
  }
  func.func @transform_8(%arg0: i32) -> (i32, i32) {
    %c0_i32 = arith.constant 0 : i32
    %c0_i32_0 = arith.constant 0 : i32
    return %arg0, %c0_i32 : i32, i32
  }
}

</mosaic_0001>

<llo_original>
// kernel: tpu_custom_call.1
$region0: #{tpu_custom_call.1}
  #allocation0 [shape = 'u32[]', space=smem, size = 0x4, offset = 0x4, fixed_abs, tag = 'smem constant byte address 0x4 - core index']
  #allocation1 [shape = 'u32[144,128]{1,0:T(1,128)}', space=vmem, size = 0x12000, scoped, tag = 'internal scratch']
  %s0 = inlined_call_operand.hbm [shape: f32[2,8,32], index: 0, kind: input, shape index: {}]
  %s1 = inlined_call_operand.hbm [shape: f32[2,8,32], index: 1, kind: input, shape index: {}]
  %s2 = inlined_call_operand.vmem [shape: f32[2,8], index: 2, kind: input, shape index: {}]
  %s3 = inlined_call_operand.vmem [shape: f32[2,8], index: 3, kind: input, shape index: {}]
  %s4 = inlined_call_operand.hbm [shape: bf16[32,128], index: 4, kind: input, shape index: {}]
  %s5 = inlined_call_operand.vmem [shape: f32[1,128], index: 5, kind: input, shape index: {}]
  %s6 = inlined_call_operand.hbm [shape: bf16[2,8,16], index: 6, kind: output, shape index: {0}]
  %s7 = inlined_call_operand.hbm [shape: bf16[2,8,16], index: 7, kind: output, shape index: {1}]
  %s8 = inlined_call_operand.hbm [shape: f32[2,128], index: 8, kind: output, shape index: {2}]
  %9 = xla_tuple %s6, %s7, %s8
  %s10 = sld [smem:[#allocation0]]
  $region62: #{tpu_custom_call.1} parent=0
    _
  %s12 = ssub.s32 1, %s10
  %s13 = scalar_select 0, %s12, %s10
  $region1: #{tpu_custom_call.1} parent=0
    #allocation2 [shape = 'u8[8192]{0}', space=vmem, size = 0x2000, scoped, tag = 'input window, operand 0, single buffered']
    #allocation3 [shape = 's32[1]{0}', space=sflag, size = 0x4, scoped, tag = 'scoped memory for tpu_custom_call.1']
    #allocation4 [shape = 's32[1]{0}', space=sflag, size = 0x4, scoped, tag = 'scoped memory for tpu_custom_call.1']
    #allocation5 [shape = 'u8[8192]{0}', space=vmem, size = 0x2000, scoped, tag = 'input window, operand 1, single buffered']
    #allocation6 [shape = 's32[1]{0}', space=sflag, size = 0x4, scoped, tag = 'scoped memory for tpu_custom_call.1']
    #allocation7 [shape = 'u8[8192]{0}', space=vmem, size = 0x2000, scoped, tag = 'input window, operand 4, single buffered']
    #allocation8 [shape = 'u8[4096]{0}', space=vmem, size = 0x1000, scoped, tag = 'output window, operand 0, single buffered']
    #allocation9 [shape = 'u8[4096]{0}', space=vmem, size = 0x1000, scoped, tag = 'output window, operand 1, single buffered']
    #allocation10 [shape = 's32[1]{0}', space=sflag, size = 0x4, scoped, tag = 'scoped memory for tpu_custom_call.1']
    #allocation11 [shape = 'u8[1024]{0}', space=vmem, size = 0x400, scoped, tag = 'output window, operand 2, single buffered']
    %14 = vsyncpa [#allocation3], 0
    %15 = vsyncpa [#allocation6], 0
    %16 = vsyncpa [#allocation4], 0
    %17 = vsyncpa [#allocation10], 0
    // Predicated region
    $region2: #{tpu_custom_call.1} parent=1 // pred_check
      _
    $region3: #{tpu_custom_call.1} parent=1 // pred_check_branch
      %19 = sbr.rel (0) target = $region5
    $region4: #{tpu_custom_call.1} parent=1 // pred_region
      %s21 = ssub.s32 256, 256
      %22 = vsyncadd [#allocation3], %s21
      %s23 = sshll.u32 [#allocation2], 4
      %s24 = int_to_ptr.vmem [resolvable:$true] %s23
      %29 = dma.hbm_to_vmem [thread:$0]  %s0, 256, %s24, [#allocation3], 128, 128, 8
    $region5: #{tpu_custom_call.1} parent=1 // pred_fallthru
      _
    // Predicated region
    $region6: #{tpu_custom_call.1} parent=1 // pred_check
      _
    $region7: #{tpu_custom_call.1} parent=1 // pred_check_branch
      %31 = sbr.rel (0) target = $region9
    $region8: #{tpu_custom_call.1} parent=1 // pred_region
      %s33 = ssub.s32 256, 256
      %34 = vsyncadd [#allocation6], %s33
      %s35 = sshll.u32 [#allocation5], 4
      %s36 = int_to_ptr.vmem [resolvable:$true] %s35
      %41 = dma.hbm_to_vmem [thread:$0]  %s1, 256, %s36, [#allocation6], 128, 128, 8
    $region9: #{tpu_custom_call.1} parent=1 // pred_fallthru
      _
    // Predicated region
    $region10: #{tpu_custom_call.1} parent=1 // pred_check
      _
    $region11: #{tpu_custom_call.1} parent=1 // pred_check_branch
      %43 = sbr.rel (0) target = $region13
    $region12: #{tpu_custom_call.1} parent=1 // pred_region
      _
    $region13: #{tpu_custom_call.1} parent=1 // pred_fallthru
      _
    // Predicated region
    $region14: #{tpu_custom_call.1} parent=1 // pred_check
      _
    $region15: #{tpu_custom_call.1} parent=1 // pred_check_branch
      %45 = sbr.rel (0) target = $region17
    $region16: #{tpu_custom_call.1} parent=1 // pred_region
      _
    $region17: #{tpu_custom_call.1} parent=1 // pred_fallthru
      _
    // Predicated region
    $region18: #{tpu_custom_call.1} parent=1 // pred_check
      _
    $region19: #{tpu_custom_call.1} parent=1 // pred_check_branch
      %47 = sbr.rel (0) target = $region21
    $region20: #{tpu_custom_call.1} parent=1 // pred_region
      %s49 = ssub.s32 256, 256
      %50 = vsyncadd [#allocation6], %s49
      %s51 = sshll.u32 [#allocation7], 4
      %s52 = int_to_ptr.vmem [resolvable:$true] %s51
      %57 = dma.hbm_to_vmem [thread:$0]  %s4, 256, %s52, [#allocation6], 64, 64, 4
    $region21: #{tpu_custom_call.1} parent=1 // pred_fallthru
      _
    // Predicated region
    $region22: #{tpu_custom_call.1} parent=1 // pred_check
      _
    $region23: #{tpu_custom_call.1} parent=1 // pred_check_branch
      %59 = sbr.rel (0) target = $region25
    $region24: #{tpu_custom_call.1} parent=1 // pred_region
      _
    $region25: #{tpu_custom_call.1} parent=1 // pred_fallthru
      _
    // Predicated region
    $region26: #{tpu_custom_call.1} parent=1 // pred_check
      _
    $region27: #{tpu_custom_call.1} parent=1 // pred_check_branch
      %61 = sbr.rel (0) target = $region29
    $region28: #{tpu_custom_call.1} parent=1 // pred_region
      %62 = dma.done [#allocation3], 256
    $region29: #{tpu_custom_call.1} parent=1 // pred_fallthru
      _
    // Predicated region
    $region30: #{tpu_custom_call.1} parent=1 // pred_check
      _
    $region31: #{tpu_custom_call.1} parent=1 // pred_check_branch
      %64 = sbr.rel (0) target = $region33
    $region32: #{tpu_custom_call.1} parent=1 // pred_region
      %65 = dma.done [#allocation6], 256
    $region33: #{tpu_custom_call.1} parent=1 // pred_fallthru
      _
    // Predicated region
    $region34: #{tpu_custom_call.1} parent=1 // pred_check
      _
    $region35: #{tpu_custom_call.1} parent=1 // pred_check_branch
      %67 = sbr.rel (0) target = $region37
    $region36: #{tpu_custom_call.1} parent=1 // pred_region
      %68 = dma.done [#allocation6], 256
    $region37: #{tpu_custom_call.1} parent=1 // pred_fallthru
      _
    %v70 = vld [vmem:[#allocation7] sm:$0xf]
    %v71 = vld [vmem:[#allocation7 + $0x4] sm:$0xf]
    %v72 = vld [vmem:[#allocation7 + $0x8] sm:$0xf]
    %v73 = vld [vmem:[#allocation7 + $0xc] sm:$0xf]
    %v74 = vld [vmem:[%s5] sm:$0x1]
    %v75 = vld [vmem:[#allocation2] sm:$0xff]
    %v76 = vld [vmem:[#allocation2 + $0x8] sm:$0xff]
    %v77 = vpack.c.bf16 %v75, %v75
    %v78 = vpack.c.bf16 %v76, %v76
    %v79 = vld [vmem:[#allocation5] sm:$0xff]
    %v80 = vld [vmem:[#allocation5 + $0x8] sm:$0xff]
    %v81 = vpack.c.bf16 %v79, %v79
    %v82 = vpack.c.bf16 %v80, %v80
    %v84 = vlaneseq
    %v85 = vshrl.u32 %v84, 7
    %v86 = vsub.s32 0, %v85
    %v87 = vrot.slane %v74, %v86
    %v91 = vunpack.c.l.b16 %v77
    %v92 = vunpack.c.l.b16 %v78
    %v93 = vpack.c.b16 %v92, %v91
    %v98 = vunpack.c.l.b16 %v70
    %v99 = vunpack.c.l.b16 %v71
    %v100 = vunpack.c.l.b16 %v72
    %v101 = vunpack.c.l.b16 %v73
    %v102 = vpack.c.b16 %v99, %v98
    %v103 = vpack.c.b16 %v101, %v100
    %vm106 = vcmask 261120
    %v108 = vsel %vm106, %v93, 0
    %110 = vmatprep.subr.bf16.mxu0 0
    %111 = vmatpush1.bf16.msra.mxu0 0
    %112 = vmatprep.subr.bf16.mxu0 0
    %113 = vmatpush1.bf16.msra.mxu0 0
    %114 = vmatprep.subr.bf16.mxu0 0
    %115 = vmatpush1.bf16.msra.mxu0 0
    %116 = vmatprep.subr.bf16.mxu0 0
    %117 = vmatpush1.bf16.msra.mxu0 0
    %118 = vmatprep.subr.bf16.mxu0 0
    %119 = vmatpush1.bf16.msra.mxu0 0
    %120 = vmatprep.subr.bf16.mxu0 0
    %121 = vmatpush1.bf16.msra.mxu0 0
    %122 = vmatprep.subr.bf16.mxu0 0
    %123 = vmatpush1.bf16.msra.mxu0 %v103
    %124 = vmatprep.subr.bf16.mxu0 0
    %125 = vmatpush1.bf16.msra.mxu0 %v102
    %126 = vmatprep.subr.bf16.mxu0 0
    %127 = vmatpush2.bf16.msra.mxu0 0
    %128 = vmatprep.subr.bf16.mxu0 0
    %129 = vmatpush2.bf16.msra.mxu0 0
    %130 = vmatprep.subr.bf16.mxu0 0
    %131 = vmatpush2.bf16.msra.mxu0 0
    %132 = vmatprep.subr.bf16.mxu0 0
    %133 = vmatpush2.bf16.msra.mxu0 0
    %134 = vmatprep.subr.bf16.mxu0 0
    %135 = vmatpush2.bf16.msra.mxu0 0
    %136 = vmatprep.subr.bf16.mxu0 0
    %137 = vmatpush2.bf16.msra.mxu0 0
    %138 = vmatprep.subr.bf16.mxu0 0
    %139 = vmatpush2.bf16.msra.mxu0 0
    %140 = vmatprep.subr.bf16.mxu0 0
    %141 = vmatpush2.bf16.msra.mxu0 0
    %142 = vmatprep.mubr.bf16.mxu0 0
    %143 = vmatmul.mubr.bf16.gmra.mxu0 %v108
    %v144 = vpop.f32.mrf.mxu0
    %v145 = vadd.f32 %v87, %v144
    %v146 = vpop.f32.mrf.mxu0
    %v147 = vpop.f32.mrf.mxu0
    %v148 = vadd.f32 %v87, %v147
    %v149 = vpop.f32.mrf.mxu0
    %150 = vdwg.mxu0
    %v153 = vunpack.c.l.b16 %v81
    %v154 = vunpack.c.l.b16 %v82
    %v155 = vpack.c.b16 %v154, %v153
    %v157 = vsel %vm106, %v155, 0
    %159 = vmatprep.subr.bf16.mxu0 0
    %160 = vmatpush1.bf16.msra.mxu0 0
    %161 = vmatprep.subr.bf16.mxu0 0
    %162 = vmatpush1.bf16.msra.mxu0 0
    %163 = vmatprep.subr.bf16.mxu0 0
    %164 = vmatpush1.bf16.msra.mxu0 0
    %165 = vmatprep.subr.bf16.mxu0 0
    %166 = vmatpush1.bf16.msra.mxu0 0
    %167 = vmatprep.subr.bf16.mxu0 0
    %168 = vmatpush1.bf16.msra.mxu0 0
    %169 = vmatprep.subr.bf16.mxu0 0
    %170 = vmatpush1.bf16.msra.mxu0 0
    %171 = vmatprep.subr.bf16.mxu0 0
    %172 = vmatpush1.bf16.msra.mxu0 %v103
    %173 = vmatprep.subr.bf16.mxu0 0
    %174 = vmatpush1.bf16.msra.mxu0 %v102
    %175 = vmatprep.subr.bf16.mxu0 0
    %176 = vmatpush2.bf16.msra.mxu0 0
    %177 = vmatprep.subr.bf16.mxu0 0
    %178 = vmatpush2.bf16.msra.mxu0 0
    %179 = vmatprep.subr.bf16.mxu0 0
    %180 = vmatpush2.bf16.msra.mxu0 0
    %181 = vmatprep.subr.bf16.mxu0 0
    %182 = vmatpush2.bf16.msra.mxu0 0
    %183 = vmatprep.subr.bf16.mxu0 0
    %184 = vmatpush2.bf16.msra.mxu0 0
    %185 = vmatprep.subr.bf16.mxu0 0
    %186 = vmatpush2.bf16.msra.mxu0 0
    %187 = vmatprep.subr.bf16.mxu0 0
    %188 = vmatpush2.bf16.msra.mxu0 0
    %189 = vmatprep.subr.bf16.mxu0 0
    %190 = vmatpush2.bf16.msra.mxu0 0
    %191 = vmatprep.mubr.bf16.mxu0 0
    %192 = vmatmul.mubr.bf16.gmra.mxu0 %v157
    %v193 = vpop.f32.mrf.mxu0
    %v194 = vadd.f32 %v87, %v193
    %v195 = vpop.f32.mrf.mxu0
    %v196 = vpop.f32.mrf.mxu0
    %v197 = vadd.f32 %v87, %v196
    %v198 = vpop.f32.mrf.mxu0
    %199 = vdwg.mxu0
    %v200 = vpack.c.bf16 %v145, %v145
    %v201 = vpack.c.bf16 %v148, %v148
    %vm202 = vcmask 125952
    %203 = vst.msk [vmem:[#allocation8] sm:$0xf] %vm202, %v200
    %204 = vst.msk [vmem:[#allocation8 + $0x4] sm:$0xf] %vm202, %v201
    %v205 = vpack.c.bf16 %v194, %v194
    %v206 = vpack.c.bf16 %v197, %v197
    %207 = vst.msk [vmem:[#allocation9] sm:$0xf] %vm202, %v205
    %208 = vst.msk [vmem:[#allocation9 + $0x4] sm:$0xf] %vm202, %v206
    %v209 = vlaneseq
    %v210 = vand.u32 %v209, 127
    %v211 = vld [vmem:[%s2] sm:$0x3]
    %v212 = vld [vmem:[%s3] sm:$0x3]
    %213 = vmax.xlane.f32.xlu0 %v145
    %v214 = vpop.xlane.xlu0 %213
    %215 = vmax.xlane.f32.xlu0 %v148
    %v216 = vpop.xlane.xlu0 %215
    %vm217 = vcmp.ge.f32.partialorder %v145, %v214
    %vm218 = vcmp.ge.f32.partialorder %v148, %v216
    %v219 = vsel %vm217, %v210, 128
    %v220 = vsel %vm218, %v210, 128
    %v221 = vand.u32 %v219, 65535
    %v222 = vshra.s32 %v219, 16
    %v223 = vcvt.s32.f32 %v221
    %v224 = vcvt.s32.f32 %v222
    %225 = vmin.xlane.f32.xlu0 %v224
    %v226 = vpop.xlane.xlu0 %225
    %vm227 = vcmp.eq.f32.partialorder %v224, %v226
    %v228 = vsel %vm227, %v223, inf
    %229 = vmin.xlane.f32.xlu0 %v228
    %v230 = vpop.xlane.xlu0 %229
    %v231 = vcvt.f32.s32 %v230
    %v232 = vcvt.f32.s32 %v226
    %v233 = vshll.u32 %v232, 16
    %v234 = vadd.s32 %v233, %v231
    %v235 = vand.u32 %v220, 65535
    %v236 = vshra.s32 %v220, 16
    %v237 = vcvt.s32.f32 %v235
    %v238 = vcvt.s32.f32 %v236
    %239 = vmin.xlane.f32.xlu0 %v238
    %v240 = vpop.xlane.xlu0 %239
    %vm241 = vcmp.eq.f32.partialorder %v238, %v240
    %v242 = vsel %vm241, %v237, inf
    %243 = vmin.xlane.f32.xlu0 %v242
    %v244 = vpop.xlane.xlu0 %243
    %v245 = vcvt.f32.s32 %v244
    %v246 = vcvt.f32.s32 %v240
    %v247 = vshll.u32 %v246, 16
    %v248 = vadd.s32 %v247, %v245
    %vm249 = vcmp.eq.s32.totalorder %v210, %v234
    %vm250 = vcmp.eq.s32.totalorder %v210, %v248
    %v251 = vsel %vm249, 1, 0
    %v252 = vsel %vm250, 1, 0
    %v253 = vcvt.s32.f32 %v251
    %v254 = vcvt.s32.f32 %v252
    %v255 = vlaneseq
    %v256 = vshrl.u32 %v255, 7
    %v257 = vsub.s32 0, %v256
    %v258 = vrot.slane %v211, %v257
    %260 = vbcast.lane.b32.xlu0 %v258, 256
    %v261 = vpop.permute.xlu0 %260
    %v262 = vlaneseq
    %v263 = vshrl.u32 %v262, 7
    %v264 = vsub.s32 1, %v263
    %v265 = vrot.slane %v211, %v264
    %267 = vbcast.lane.b32.xlu0 %v265, 256
    %v268 = vpop.permute.xlu0 %267
    %v269 = vmul.f32 %v253, %v261
    %v270 = vmul.f32 %v254, %v268
    %v271 = vrot.slane %v269, 4
    %v272 = vadd.f32 %v269, %v271
    %v273 = vrot.slane %v272, 2
    %v274 = vadd.f32 %v272, %v273
    %v275 = vrot.slane %v274, 1
    %v276 = vadd.f32 %v274, %v275
    %v277 = vrot.slane %v270, 4
    %v278 = vadd.f32 %v270, %v277
    %v279 = vrot.slane %v278, 2
    %v280 = vadd.f32 %v278, %v279
    %v281 = vrot.slane %v280, 1
    %v282 = vadd.f32 %v280, %v281
    %v283 = vadd.f32 %v276, 0.0
    %v284 = vadd.f32 %v282, 0.0
    %285 = vmax.xlane.f32.xlu0 %v194
    %v286 = vpop.xlane.xlu0 %285
    %287 = vmax.xlane.f32.xlu0 %v197
    %v288 = vpop.xlane.xlu0 %287
    %vm289 = vcmp.ge.f32.partialorder %v194, %v286
    %vm290 = vcmp.ge.f32.partialorder %v197, %v288
    %v291 = vsel %vm289, %v210, 128
    %v292 = vsel %vm290, %v210, 128
    %v293 = vand.u32 %v291, 65535
    %v294 = vshra.s32 %v291, 16
    %v295 = vcvt.s32.f32 %v293
    %v296 = vcvt.s32.f32 %v294
    %297 = vmin.xlane.f32.xlu0 %v296
    %v298 = vpop.xlane.xlu0 %297
    %vm299 = vcmp.eq.f32.partialorder %v296, %v298
    %v300 = vsel %vm299, %v295, inf
    %301 = vmin.xlane.f32.xlu0 %v300
    %v302 = vpop.xlane.xlu0 %301
    %v303 = vcvt.f32.s32 %v302
    %v304 = vcvt.f32.s32 %v298
    %v305 = vshll.u32 %v304, 16
    %v306 = vadd.s32 %v305, %v303
    %v307 = vand.u32 %v292, 65535
    %v308 = vshra.s32 %v292, 16
    %v309 = vcvt.s32.f32 %v307
    %v310 = vcvt.s32.f32 %v308
    %311 = vmin.xlane.f32.xlu0 %v310
    %v312 = vpop.xlane.xlu0 %311
    %vm313 = vcmp.eq.f32.partialorder %v310, %v312
    %v314 = vsel %vm313, %v309, inf
    %315 = vmin.xlane.f32.xlu0 %v314
    %v316 = vpop.xlane.xlu0 %315
    %v317 = vcvt.f32.s32 %v316
    %v318 = vcvt.f32.s32 %v312
    %v319 = vshll.u32 %v318, 16
    %v320 = vadd.s32 %v319, %v317
    %vm321 = vcmp.eq.s32.totalorder %v210, %v306
    %vm322 = vcmp.eq.s32.totalorder %v210, %v320
    %v323 = vsel %vm321, 1, 0
    %v324 = vsel %vm322, 1, 0
    %v325 = vcvt.s32.f32 %v323
    %v326 = vcvt.s32.f32 %v324
    %v327 = vlaneseq
    %v328 = vshrl.u32 %v327, 7
    %v329 = vsub.s32 0, %v328
    %v330 = vrot.slane %v212, %v329
    %332 = vbcast.lane.b32.xlu0 %v330, 256
    %v333 = vpop.permute.xlu0 %332
    %v334 = vlaneseq
    %v335 = vshrl.u32 %v334, 7
    %v336 = vsub.s32 1, %v335
    %v337 = vrot.slane %v212, %v336
    %339 = vbcast.lane.b32.xlu0 %v337, 256
    %v340 = vpop.permute.xlu0 %339
    %v341 = vmul.f32 %v325, %v333
    %v342 = vmul.f32 %v326, %v340
    %v343 = vrot.slane %v341, 4
    %v344 = vadd.f32 %v341, %v343
    %v345 = vrot.slane %v344, 2
    %v346 = vadd.f32 %v344, %v345
    %v347 = vrot.slane %v346, 1
    %v348 = vadd.f32 %v346, %v347
    %v349 = vrot.slane %v342, 4
    %v350 = vadd.f32 %v342, %v349
    %v351 = vrot.slane %v350, 2
    %v352 = vadd.f32 %v350, %v351
    %v353 = vrot.slane %v352, 1
    %v354 = vadd.f32 %v352, %v353
    %v355 = vadd.f32 %v348, 0.0
    %v356 = vadd.f32 %v354, 0.0
    %v357 = vmin.f32 %v283, %v355
    %v358 = vmin.f32 %v284, %v356
    %vm361 = vcmask 1041409
    %v362 = vsel %vm361, %v358, %v357
    %vm364 = vcmask 1041408
    %v365 = vsel %vm364, %v362, 0.0
    %366 = vadd.xlane.f32.xlu0 %v365
    %v367 = vpop.xlane.xlu0 %366
    %v370 = vsel %vm361, %v284, %v283
    %v372 = vsel %vm364, %v370, 0.0
    %373 = vadd.xlane.f32.xlu0 %v372
    %v374 = vpop.xlane.xlu0 %373
    %v377 = vsel %vm361, %v356, %v355
    %v379 = vsel %vm364, %v377, 0.0
    %380 = vadd.xlane.f32.xlu0 %v379
    %v381 = vpop.xlane.xlu0 %380
    %v382 = vmax.f32 %v374, 1.0
    %v383 = vrcp.pop %v382
    %v384 = vmul.f32 %v367, %v383
    %v385 = vmax.f32 %v381, 1.0
    %v386 = vrcp.pop %v385
    %v387 = vmul.f32 %v367, %v386
    %v388 = vadd.f32 %v384, %v387
    %v389 = vmul.f32 %v384, 2.0
    %v390 = vmul.f32 %v389, %v387
    %v391 = vmax.f32 %v388, 1e-12
    %v392 = vrcp.pop %v391
    %v393 = vmul.f32 %v390, %v392
    %vm394 = vcmp.gt.f32.partialorder %v388, 0.0
    %v395 = vsel %vm394, %v393, 0.0
    %vm396 = vcmp.eq.f32.partialorder %v374, 0.0
    %vm397 = vcmp.eq.f32.partialorder %v381, 0.0
    %vm398 = vmor %vm396, %vm397
    %v399 = vsel %vm398, 0.0, %v395
    %400 = vst [vmem:[#allocation11] sm:$0x3] %v399
    // Predicated region
    $region38: #{tpu_custom_call.1} parent=1 // pred_check
      _
    $region39: #{tpu_custom_call.1} parent=1 // pred_check_branch
      %402 = sbr.rel (0) target = $region41
    $region40: #{tpu_custom_call.1} parent=1 // pred_region
      %s404 = ssub.s32 128, 128
      %405 = vsyncadd [#allocation4], %s404
      %s406 = sshll.u32 [#allocation8], 4
      %s407 = int_to_ptr.vmem [resolvable:$true] %s406
      %412 = dma.vmem_to_hbm [thread:$0]  %s407, 128, %s6, [#allocation4], 64, 64, 4
    $region41: #{tpu_custom_call.1} parent=1 // pred_fallthru
      _
    // Predicated region
    $region42: #{tpu_custom_call.1} parent=1 // pred_check
      _
    $region43: #{tpu_custom_call.1} parent=1 // pred_check_branch
      %414 = sbr.rel (0) target = $region45
    $region44: #{tpu_custom_call.1} parent=1 // pred_region
      %s416 = ssub.s32 128, 128
      %417 = vsyncadd [#allocation10], %s416
      %s418 = sshll.u32 [#allocation9], 4
      %s419 = int_to_ptr.vmem [resolvable:$true] %s418
      %424 = dma.vmem_to_hbm [thread:$0]  %s419, 128, %s7, [#allocation10], 64, 64, 4
    $region45: #{tpu_custom_call.1} parent=1 // pred_fallthru
      _
    // Predicated region
    $region46: #{tpu_custom_call.1} parent=1 // pred_check
      _
    $region47: #{tpu_custom_call.1} parent=1 // pred_check_branch
      %426 = sbr.rel (0) target = $region49
    $region48: #{tpu_custom_call.1} parent=1 // pred_region
      %s428 = ssub.s32 32, 32
      %429 = vsyncadd [#allocation10], %s428
      %s431 = sshll.u32 [#allocation11], 4
      %s432 = int_to_ptr.vmem [resolvable:$true] %s431
      %434 = dma.vmem_to_hbm [thread:$0]  %s432, 32, %s8, [#allocation10]
    $region49: #{tpu_custom_call.1} parent=1 // pred_fallthru
      _
    // Predicated region
    $region50: #{tpu_custom_call.1} parent=1 // pred_check
      _
    $region51: #{tpu_custom_call.1} parent=1 // pred_check_branch
      %436 = sbr.rel (0) target = $region53
    $region52: #{tpu_custom_call.1} parent=1 // pred_region
      %437 = dma.done [#allocation4], 128
    $region53: #{tpu_custom_call.1} parent=1 // pred_fallthru
      _
    // Predicated region
    $region54: #{tpu_custom_call.1} parent=1 // pred_check
      _
    $region55: #{tpu_custom_call.1} parent=1 // pred_check_branch
      %439 = sbr.rel (0) target = $region57
    $region56: #{tpu_custom_call.1} parent=1 // pred_region
      %440 = dma.done [#allocation10], 128
    $region57: #{tpu_custom_call.1} parent=1 // pred_fallthru
      _
    // Predicated region
    $region58: #{tpu_custom_call.1} parent=1 // pred_check
      _
    $region59: #{tpu_custom_call.1} parent=1 // pred_check_branch
      %442 = sbr.rel (0) target = $region61
    $region60: #{tpu_custom_call.1} parent=1 // pred_region
      %443 = dma.done [#allocation10], 32
    $region61: #{tpu_custom_call.1} parent=1 // pred_fallthru
      _
    %444 = vsyncpa [#allocation3], 1
    %445 = vsyncpa [#allocation6], 1
    %446 = vsyncpa [#allocation4], 1
    %447 = vsyncpa [#allocation10], 1

</llo_original>
